<compile_context>
chip_gen: v5e
topology: v5e:2x2
jax: 0.10.0
libtpu: 0.0.40
codegen_flags: <defaults>
</compile_context>

<pallas_src>
from functools import partial

import jax
import jax.numpy as jnp
from jax.experimental import pallas as pl
from jax.experimental.pallas import tpu as pltpu


# ----------------------------------------------------------------------------
# Pallas kernel: batched fused projections + attention + fc (per grid step).
# ----------------------------------------------------------------------------
def _mha_kernel(q_ref, k_ref, v_ref, wqkv_ref, wfc_ref, b_ref, o_ref, *,
                heads, mxu_bf16):
    B, Lq, E = q_ref.shape
    Lk = k_ref.shape[1]
    D = E // heads
    rows_q = B * Lq
    cdt = jnp.bfloat16 if mxu_bf16 else jnp.float32

    # Flatten (B, L, E) -> (B*L, E): lane dim untouched and L is a multiple of
    # the 8-row sublane tile, so these reshapes are layout-preserving.
    qf = q_ref[...].reshape(rows_q, E).astype(cdt)
    kf = k_ref[...].reshape(B * Lk, E).astype(cdt)
    vf = v_ref[...].reshape(B * Lk, E).astype(cdt)

    # All-head projections as single lane-dense MXU matmuls against the
    # pre-transposed block-diagonal weights (1/sqrt(E) already folded into Wq).
    qp = jnp.dot(qf, wqkv_ref[0].astype(cdt), preferred_element_type=jnp.float32)
    kp = jnp.dot(kf, wqkv_ref[1].astype(cdt), preferred_element_type=jnp.float32)
    vp = jnp.dot(vf, wqkv_ref[2].astype(cdt), preferred_element_type=jnp.float32)

    qp = qp.reshape(B, Lq, E)
    kp = kp.reshape(B, Lk, E)
    vp = vp.reshape(B, Lk, E)

    # fc accumulator lives in vregs (no VMEM scratch); seeded with the bias.
    acc = jnp.broadcast_to(b_ref[...].astype(jnp.float32), (rows_q, E))

    # TODO(synk): static unroll is fine at heads=4; move heads to a grid axis
    #             or lax.fori_loop before scaling head count (vreg pressure).
    for h in range(heads):
        lo = h * D
        qh = qp[:, :, lo:lo + D].astype(cdt)          # (B, Lq, D)
        kh = kp[:, :, lo:lo + D].astype(cdt)          # (B, Lk, D)
        vh = vp[:, :, lo:lo + D].astype(cdt)          # (B, Lk, D)

        # Per-batch scores via batched dot_general (no transposes).
        s = jnp.einsum('bqd,bkd->bqk', qh, kh,
                       preferred_element_type=jnp.float32)       # (B, Lq, Lk)
        s = s - jnp.max(s, axis=-1, keepdims=True)
        p = jnp.exp(s)
        p = p * pl.reciprocal(jnp.sum(p, axis=-1, keepdims=True), approx=False)

        ctx = jnp.einsum('bqk,bkd->bqd', p.astype(cdt), vh,
                         preferred_element_type=jnp.float32)     # (B, Lq, D)

        # Fused fc: this head's (D, E) slice of Wfc^T (sublane-aligned ref
        # slice), accumulated straight into the register accumulator.
        acc = acc + jnp.dot(ctx.reshape(rows_q, D).astype(cdt),
                            wfc_ref[lo:lo + D, :].astype(cdt),
                            preferred_element_type=jnp.float32)

    # (B*Lq, E) -> (B, Lq, E) is again a layout-preserving row split.
    o_ref[...] = acc.reshape(B, Lq, E).astype(o_ref.dtype)


# ----------------------------------------------------------------------------
# Wrapper
# ----------------------------------------------------------------------------
def _largest_divisor_leq(n, cap):
    for b in range(min(n, cap), 0, -1):
        if n % b == 0:
            return b
    return 1


def multi_head_attention(v, k, q, params, *, embed_size, heads,
                         batch_block=None, mxu_bf16=False):
    """Forward pass matching MultiHeadAttention.forward with m=None."""
    E = embed_size
    D = E // heads
    assert D * heads == E, "embed_size needs to be divisible by heads"
    N, q_len, _ = q.shape
    k_len, v_len = k.shape[1], v.shape[1]
    assert k_len == v_len, "attention contraction requires k_len == v_len"

    if batch_block is None:
        # A few batch rows per grid step amortize per-step overhead; on v7x
        # choose a value leaving >= 2 grid steps for the two TensorCores.
        batch_block = _largest_divisor_leq(N, 8)
    assert N % batch_block == 0

    # Shared Linear(D, D) per head -> block-diagonal (E, E), pre-transposed so
    # the kernel computes x @ W; 1/sqrt(embed_size) folded into Wq.
    scale = 1.0 / (float(embed_size) ** 0.5)
    eye = jnp.eye(heads, dtype=params["wq"].dtype)
    w_dtype = jnp.bfloat16 if mxu_bf16 else params["wq"].dtype
    w_qkv = jnp.stack([
        jnp.kron(eye, params["wq"].T * scale),
        jnp.kron(eye, params["wk"].T),
        jnp.kron(eye, params["wv"].T),
    ]).astype(w_dtype)                                   # (3, E, E)
    w_fc_t = params["w_fc"].T.astype(w_dtype)            # (heads*D, E)
    b_fc = params["b_fc"].reshape(1, E).astype(jnp.float32)

    kernel = partial(_mha_kernel, heads=heads, mxu_bf16=mxu_bf16)

    return pl.pallas_call(
        kernel,
        out_shape=jax.ShapeDtypeStruct((N, q_len, E), q.dtype),
        grid_spec=pltpu.PrefetchScalarGridSpec(
            num_scalar_prefetch=0,
            grid=(N // batch_block,),
            in_specs=[
                pl.BlockSpec((batch_block, q_len, E), lambda n: (n, 0, 0)),
                pl.BlockSpec((batch_block, k_len, E), lambda n: (n, 0, 0)),
                pl.BlockSpec((batch_block, v_len, E), lambda n: (n, 0, 0)),
                # Constant operands (index_map independent of n -> DMA'd once).
                pl.BlockSpec((3, E, E), lambda n: (0, 0, 0)),
                pl.BlockSpec((E, E), lambda n: (0, 0)),
                pl.BlockSpec((1, E), lambda n: (0, 0)),
            ],
            out_specs=pl.BlockSpec((batch_block, q_len, E), lambda n: (n, 0, 0)),
        ),
        compiler_params=pltpu.CompilerParams(
            dimension_semantics=("parallel",)),
    )(q, k, v, w_qkv, w_fc_t, b_fc)


# ----------------------------------------------------------------------------
# Pure-JAX reference (matches the PyTorch semantics, m=None)
# ----------------------------------------------------------------------------
def reference(v, k, q, params, *, embed_size, heads):
    D = embed_size // heads
    N, q_len, _ = q.shape
    k_len, v_len = k.shape[1], v.shape[1]
    vr = v.reshape(N, v_len, heads, D) @ params["wv"].T
    kr = k.reshape(N, k_len, heads, D) @ params["wk"].T
    qr = q.reshape(N, q_len, heads, D) @ params["wq"].T
    attn = jnp.einsum("nqhd,nkhd->nhqk", qr, kr) / (embed_size ** 0.5)
    attn = jax.nn.softmax(attn, axis=3)
    out = jnp.einsum("nhql,nlhd->nqhd", attn, vr)
    out = out.reshape(N, q_len, heads * D)
    return out @ params["w_fc"].T + params["b_fc"]


# ----------------------------------------------------------------------------
# Main
# ----------------------------------------------------------------------------
if __name__ == "__main__":
    embed_size, heads = 32, 4
    D = embed_size // heads
    N, q_len, k_len, v_len = 2, 8, 8, 8

    key = jax.random.PRNGKey(0)
    ks = jax.random.split(key, 8)

    # nn.Linear convention: weight = (out_features, in_features).
    params = {
        "wq": jax.random.normal(ks[0], (D, D), jnp.float32) * 0.1,
        "wk": jax.random.normal(ks[1], (D, D), jnp.float32) * 0.1,
        "wv": jax.random.normal(ks[2], (D, D), jnp.float32) * 0.1,
        "w_fc": jax.random.normal(ks[3], (embed_size, heads * D), jnp.float32) * 0.1,
        "b_fc": jax.random.normal(ks[4], (embed_size,), jnp.float32) * 0.1,
    }

    v_in = jax.random.normal(ks[5], (N, v_len, embed_size), jnp.float32)
    k_in = jax.random.normal(ks[6], (N, k_len, embed_size), jnp.float32)
    q_in = jax.random.normal(ks[7], (N, q_len, embed_size), jnp.float32)

    out = multi_head_attention(v_in, k_in, q_in, params,
                               embed_size=embed_size, heads=heads)
    out = jax.block_until_ready(out)

    ref = reference(v_in, k_in, q_in, params, embed_size=embed_size, heads=heads)
    assert out.shape == (N, q_len, embed_size)
    assert jnp.allclose(out, ref, atol=2e-3, rtol=2e-3), \
        f"max abs err {jnp.max(jnp.abs(out - ref))}"

    print("KERNEL_OK")
</pallas_src>

<mosaic_0001>
module attributes {stable_mosaic.version = 11 : i64} {
  func.func @_mha_kernel(%arg0: i32, %arg1: memref<2x8x32xf32, #tpu.memory_space<vmem>>, %arg2: memref<2x8x32xf32, #tpu.memory_space<vmem>>, %arg3: memref<2x8x32xf32, #tpu.memory_space<vmem>>, %arg4: memref<3x32x32xf32, #tpu.memory_space<vmem>>, %arg5: memref<32x32xf32, #tpu.memory_space<vmem>>, %arg6: memref<1x32xf32, #tpu.memory_space<vmem>>, %arg7: memref<2x8x32xf32, #tpu.memory_space<vmem>>) attributes {dimension_semantics = [#tpu.dimension_semantics<parallel>], iteration_bounds = array<i64: 1>, scalar_prefetch = 0 : i64, scratch_operands = 0 : i64, tpu.core_type = #tpu.core_type<tc>, window_params = [{transform_indices = @transform_0, window_bounds = array<i64: 2, 8, 32>}, {transform_indices = @transform_1, window_bounds = array<i64: 2, 8, 32>}, {transform_indices = @transform_2, window_bounds = array<i64: 2, 8, 32>}, {pipeline_mode = #tpu.pipeline_mode<synchronous>, transform_indices = @transform_3, window_bounds = array<i64: 3, 32, 32>}, {pipeline_mode = #tpu.pipeline_mode<synchronous>, transform_indices = @transform_4, window_bounds = array<i64: 32, 32>}, {pipeline_mode = #tpu.pipeline_mode<synchronous>, transform_indices = @transform_5, window_bounds = array<i64: 1, 32>}, {transform_indices = @transform_6, window_bounds = array<i64: 2, 8, 32>}]} {
    %c0 = arith.constant 0 : index
    %c0_0 = arith.constant 0 : index
    %c0_1 = arith.constant 0 : index
    %0 = vector.load %arg1[%c0, %c0_0, %c0_1] : memref<2x8x32xf32, #tpu.memory_space<vmem>>, vector<2x8x32xf32>
    %1 = vector.shape_cast %0 : vector<2x8x32xf32> to vector<16x32xf32>
    %c0_2 = arith.constant 0 : index
    %c0_3 = arith.constant 0 : index
    %c0_4 = arith.constant 0 : index
    %2 = vector.load %arg2[%c0_2, %c0_3, %c0_4] : memref<2x8x32xf32, #tpu.memory_space<vmem>>, vector<2x8x32xf32>
    %3 = vector.shape_cast %2 : vector<2x8x32xf32> to vector<16x32xf32>
    %c0_5 = arith.constant 0 : index
    %c0_6 = arith.constant 0 : index
    %c0_7 = arith.constant 0 : index
    %4 = vector.load %arg3[%c0_5, %c0_6, %c0_7] : memref<2x8x32xf32, #tpu.memory_space<vmem>>, vector<2x8x32xf32>
    %5 = vector.shape_cast %4 : vector<2x8x32xf32> to vector<16x32xf32>
    %c0_8 = arith.constant 0 : index
    %c0_9 = arith.constant 0 : index
    %c0_10 = arith.constant 0 : index
    %6 = vector.load %arg4[%c0_8, %c0_9, %c0_10] : memref<3x32x32xf32, #tpu.memory_space<vmem>>, vector<1x32x32xf32>
    %7 = vector.shape_cast %6 : vector<1x32x32xf32> to vector<32x32xf32>
    %cst = arith.constant dense<0.000000e+00> : vector<16x32xf32>
    %8 = tpu.matmul %1, %7, %cst {dimension_numbers = #tpu.dot_dimension_numbers<[1], [0], [0], [1], [0, 0, 1, 1], [], []>} : vector<16x32xf32>, vector<32x32xf32>, vector<16x32xf32> -> vector<16x32xf32>
    %c1 = arith.constant 1 : index
    %c0_11 = arith.constant 0 : index
    %c0_12 = arith.constant 0 : index
    %9 = vector.load %arg4[%c1, %c0_11, %c0_12] : memref<3x32x32xf32, #tpu.memory_space<vmem>>, vector<1x32x32xf32>
    %10 = vector.shape_cast %9 : vector<1x32x32xf32> to vector<32x32xf32>
    %cst_13 = arith.constant dense<0.000000e+00> : vector<16x32xf32>
    %11 = tpu.matmul %3, %10, %cst_13 {dimension_numbers = #tpu.dot_dimension_numbers<[1], [0], [0], [1], [0, 0, 1, 1], [], []>} : vector<16x32xf32>, vector<32x32xf32>, vector<16x32xf32> -> vector<16x32xf32>
    %c2 = arith.constant 2 : index
    %c0_14 = arith.constant 0 : index
    %c0_15 = arith.constant 0 : index
    %12 = vector.load %arg4[%c2, %c0_14, %c0_15] : memref<3x32x32xf32, #tpu.memory_space<vmem>>, vector<1x32x32xf32>
    %13 = vector.shape_cast %12 : vector<1x32x32xf32> to vector<32x32xf32>
    %cst_16 = arith.constant dense<0.000000e+00> : vector<16x32xf32>
    %14 = tpu.matmul %5, %13, %cst_16 {dimension_numbers = #tpu.dot_dimension_numbers<[1], [0], [0], [1], [0, 0, 1, 1], [], []>} : vector<16x32xf32>, vector<32x32xf32>, vector<16x32xf32> -> vector<16x32xf32>
    %15 = vector.shape_cast %8 : vector<16x32xf32> to vector<2x8x32xf32>
    %16 = vector.shape_cast %11 : vector<16x32xf32> to vector<2x8x32xf32>
    %17 = vector.shape_cast %14 : vector<16x32xf32> to vector<2x8x32xf32>
    %c0_17 = arith.constant 0 : index
    %c0_18 = arith.constant 0 : index
    %18 = vector.load %arg6[%c0_17, %c0_18] : memref<1x32xf32, #tpu.memory_space<vmem>>, vector<1x32xf32>
    %19 = vector.shape_cast %18 : vector<1x32xf32> to vector<1x32xf32>
    %20 = vector.broadcast %19 : vector<1x32xf32> to vector<16x32xf32>
    %21 = vector.extract_strided_slice %15 {offsets = [0, 0, 0], sizes = [2, 8, 8], strides = [1, 1, 1]} : vector<2x8x32xf32> to vector<2x8x8xf32>
    %22 = vector.extract_strided_slice %16 {offsets = [0, 0, 0], sizes = [2, 8, 8], strides = [1, 1, 1]} : vector<2x8x32xf32> to vector<2x8x8xf32>
    %23 = vector.extract_strided_slice %17 {offsets = [0, 0, 0], sizes = [2, 8, 8], strides = [1, 1, 1]} : vector<2x8x32xf32> to vector<2x8x8xf32>
    "tpu.trace_start"() <{level = 10 : i32, message = "bqd,bkd->bqk"}> : () -> ()
    %cst_19 = arith.constant dense<0.000000e+00> : vector<2x8x8xf32>
    %24 = tpu.matmul %21, %22, %cst_19 {dimension_numbers = #tpu.dot_dimension_numbers<[2], [2], [1], [1], [0, 0, 0, 1, 1, 1], [0], [0]>} : vector<2x8x8xf32>, vector<2x8x8xf32>, vector<2x8x8xf32> -> vector<2x8x8xf32>
    "tpu.trace_stop"() : () -> ()
    %cst_20 = arith.constant dense<0xFF800000> : vector<2x8xf32>
    %25 = vector.multi_reduction <maximumf>, %24, %cst_20 [2] : vector<2x8x8xf32> to vector<2x8xf32>
    %26 = vector.shape_cast %25 : vector<2x8xf32> to vector<2x8x1xf32>
    %27 = vector.broadcast %26 : vector<2x8x1xf32> to vector<2x8x8xf32>
    %28 = arith.subf %24, %27 : vector<2x8x8xf32>
    %29 = math.exp %28 : vector<2x8x8xf32>
    %cst_21 = arith.constant dense<0.000000e+00> : vector<2x8xf32>
    %30 = vector.multi_reduction <add>, %29, %cst_21 [2] : vector<2x8x8xf32> to vector<2x8xf32>
    %31 = vector.shape_cast %30 : vector<2x8xf32> to vector<2x8x1xf32>
    %32 = tpu.reciprocal %31 : vector<2x8x1xf32> -> vector<2x8x1xf32>
    %33 = vector.broadcast %32 : vector<2x8x1xf32> to vector<2x8x8xf32>
    %34 = arith.mulf %29, %33 : vector<2x8x8xf32>
    "tpu.trace_start"() <{level = 10 : i32, message = "bqk,bkd->bqd"}> : () -> ()
    %cst_22 = arith.constant dense<0.000000e+00> : vector<2x8x8xf32>
    %35 = tpu.matmul %34, %23, %cst_22 {dimension_numbers = #tpu.dot_dimension_numbers<[2], [1], [1], [2], [0, 0, 0, 1, 1, 2], [0], [0]>} : vector<2x8x8xf32>, vector<2x8x8xf32>, vector<2x8x8xf32> -> vector<2x8x8xf32>
    "tpu.trace_stop"() : () -> ()
    %36 = vector.shape_cast %35 : vector<2x8x8xf32> to vector<16x8xf32>
    %c0_23 = arith.constant 0 : index
    %c0_24 = arith.constant 0 : index
    %37 = vector.load %arg5[%c0_23, %c0_24] : memref<32x32xf32, #tpu.memory_space<vmem>>, vector<8x32xf32>
    %cst_25 = arith.constant dense<0.000000e+00> : vector<16x32xf32>
    %38 = tpu.matmul %36, %37, %cst_25 {dimension_numbers = #tpu.dot_dimension_numbers<[1], [0], [0], [1], [0, 0, 1, 1], [], []>} : vector<16x8xf32>, vector<8x32xf32>, vector<16x32xf32> -> vector<16x32xf32>
    %39 = arith.addf %20, %38 : vector<16x32xf32>
    %40 = vector.extract_strided_slice %15 {offsets = [0, 0, 8], sizes = [2, 8, 8], strides = [1, 1, 1]} : vector<2x8x32xf32> to vector<2x8x8xf32>
    %41 = vector.extract_strided_slice %16 {offsets = [0, 0, 8], sizes = [2, 8, 8], strides = [1, 1, 1]} : vector<2x8x32xf32> to vector<2x8x8xf32>
    %42 = vector.extract_strided_slice %17 {offsets = [0, 0, 8], sizes = [2, 8, 8], strides = [1, 1, 1]} : vector<2x8x32xf32> to vector<2x8x8xf32>
    "tpu.trace_start"() <{level = 10 : i32, message = "bqd,bkd->bqk"}> : () -> ()
    %cst_26 = arith.constant dense<0.000000e+00> : vector<2x8x8xf32>
    %43 = tpu.matmul %40, %41, %cst_26 {dimension_numbers = #tpu.dot_dimension_numbers<[2], [2], [1], [1], [0, 0, 0, 1, 1, 1], [0], [0]>} : vector<2x8x8xf32>, vector<2x8x8xf32>, vector<2x8x8xf32> -> vector<2x8x8xf32>
    "tpu.trace_stop"() : () -> ()
    %cst_27 = arith.constant dense<0xFF800000> : vector<2x8xf32>
    %44 = vector.multi_reduction <maximumf>, %43, %cst_27 [2] : vector<2x8x8xf32> to vector<2x8xf32>
    %45 = vector.shape_cast %44 : vector<2x8xf32> to vector<2x8x1xf32>
    %46 = vector.broadcast %45 : vector<2x8x1xf32> to vector<2x8x8xf32>
    %47 = arith.subf %43, %46 : vector<2x8x8xf32>
    %48 = math.exp %47 : vector<2x8x8xf32>
    %cst_28 = arith.constant dense<0.000000e+00> : vector<2x8xf32>
    %49 = vector.multi_reduction <add>, %48, %cst_28 [2] : vector<2x8x8xf32> to vector<2x8xf32>
    %50 = vector.shape_cast %49 : vector<2x8xf32> to vector<2x8x1xf32>
    %51 = tpu.reciprocal %50 : vector<2x8x1xf32> -> vector<2x8x1xf32>
    %52 = vector.broadcast %51 : vector<2x8x1xf32> to vector<2x8x8xf32>
    %53 = arith.mulf %48, %52 : vector<2x8x8xf32>
    "tpu.trace_start"() <{level = 10 : i32, message = "bqk,bkd->bqd"}> : () -> ()
    %cst_29 = arith.constant dense<0.000000e+00> : vector<2x8x8xf32>
    %54 = tpu.matmul %53, %42, %cst_29 {dimension_numbers = #tpu.dot_dimension_numbers<[2], [1], [1], [2], [0, 0, 0, 1, 1, 2], [0], [0]>} : vector<2x8x8xf32>, vector<2x8x8xf32>, vector<2x8x8xf32> -> vector<2x8x8xf32>
    "tpu.trace_stop"() : () -> ()
    %55 = vector.shape_cast %54 : vector<2x8x8xf32> to vector<16x8xf32>
    %c8 = arith.constant 8 : index
    %c0_30 = arith.constant 0 : index
    %56 = vector.load %arg5[%c8, %c0_30] : memref<32x32xf32, #tpu.memory_space<vmem>>, vector<8x32xf32>
    %cst_31 = arith.constant dense<0.000000e+00> : vector<16x32xf32>
    %57 = tpu.matmul %55, %56, %cst_31 {dimension_numbers = #tpu.dot_dimension_numbers<[1], [0], [0], [1], [0, 0, 1, 1], [], []>} : vector<16x8xf32>, vector<8x32xf32>, vector<16x32xf32> -> vector<16x32xf32>
    %58 = arith.addf %39, %57 : vector<16x32xf32>
    %59 = vector.extract_strided_slice %15 {offsets = [0, 0, 16], sizes = [2, 8, 8], strides = [1, 1, 1]} : vector<2x8x32xf32> to vector<2x8x8xf32>
    %60 = vector.extract_strided_slice %16 {offsets = [0, 0, 16], sizes = [2, 8, 8], strides = [1, 1, 1]} : vector<2x8x32xf32> to vector<2x8x8xf32>
    %61 = vector.extract_strided_slice %17 {offsets = [0, 0, 16], sizes = [2, 8, 8], strides = [1, 1, 1]} : vector<2x8x32xf32> to vector<2x8x8xf32>
    "tpu.trace_start"() <{level = 10 : i32, message = "bqd,bkd->bqk"}> : () -> ()
    %cst_32 = arith.constant dense<0.000000e+00> : vector<2x8x8xf32>
    %62 = tpu.matmul %59, %60, %cst_32 {dimension_numbers = #tpu.dot_dimension_numbers<[2], [2], [1], [1], [0, 0, 0, 1, 1, 1], [0], [0]>} : vector<2x8x8xf32>, vector<2x8x8xf32>, vector<2x8x8xf32> -> vector<2x8x8xf32>
    "tpu.trace_stop"() : () -> ()
    %cst_33 = arith.constant dense<0xFF800000> : vector<2x8xf32>
    %63 = vector.multi_reduction <maximumf>, %62, %cst_33 [2] : vector<2x8x8xf32> to vector<2x8xf32>
    %64 = vector.shape_cast %63 : vector<2x8xf32> to vector<2x8x1xf32>
    %65 = vector.broadcast %64 : vector<2x8x1xf32> to vector<2x8x8xf32>
    %66 = arith.subf %62, %65 : vector<2x8x8xf32>
    %67 = math.exp %66 : vector<2x8x8xf32>
    %cst_34 = arith.constant dense<0.000000e+00> : vector<2x8xf32>
    %68 = vector.multi_reduction <add>, %67, %cst_34 [2] : vector<2x8x8xf32> to vector<2x8xf32>
    %69 = vector.shape_cast %68 : vector<2x8xf32> to vector<2x8x1xf32>
    %70 = tpu.reciprocal %69 : vector<2x8x1xf32> -> vector<2x8x1xf32>
    %71 = vector.broadcast %70 : vector<2x8x1xf32> to vector<2x8x8xf32>
    %72 = arith.mulf %67, %71 : vector<2x8x8xf32>
    "tpu.trace_start"() <{level = 10 : i32, message = "bqk,bkd->bqd"}> : () -> ()
    %cst_35 = arith.constant dense<0.000000e+00> : vector<2x8x8xf32>
    %73 = tpu.matmul %72, %61, %cst_35 {dimension_numbers = #tpu.dot_dimension_numbers<[2], [1], [1], [2], [0, 0, 0, 1, 1, 2], [0], [0]>} : vector<2x8x8xf32>, vector<2x8x8xf32>, vector<2x8x8xf32> -> vector<2x8x8xf32>
    "tpu.trace_stop"() : () -> ()
    %74 = vector.shape_cast %73 : vector<2x8x8xf32> to vector<16x8xf32>
    %c16 = arith.constant 16 : index
    %c0_36 = arith.constant 0 : index
    %75 = vector.load %arg5[%c16, %c0_36] : memref<32x32xf32, #tpu.memory_space<vmem>>, vector<8x32xf32>
    %cst_37 = arith.constant dense<0.000000e+00> : vector<16x32xf32>
    %76 = tpu.matmul %74, %75, %cst_37 {dimension_numbers = #tpu.dot_dimension_numbers<[1], [0], [0], [1], [0, 0, 1, 1], [], []>} : vector<16x8xf32>, vector<8x32xf32>, vector<16x32xf32> -> vector<16x32xf32>
    %77 = arith.addf %58, %76 : vector<16x32xf32>
    %78 = vector.extract_strided_slice %15 {offsets = [0, 0, 24], sizes = [2, 8, 8], strides = [1, 1, 1]} : vector<2x8x32xf32> to vector<2x8x8xf32>
    %79 = vector.extract_strided_slice %16 {offsets = [0, 0, 24], sizes = [2, 8, 8], strides = [1, 1, 1]} : vector<2x8x32xf32> to vector<2x8x8xf32>
    %80 = vector.extract_strided_slice %17 {offsets = [0, 0, 24], sizes = [2, 8, 8], strides = [1, 1, 1]} : vector<2x8x32xf32> to vector<2x8x8xf32>
    "tpu.trace_start"() <{level = 10 : i32, message = "bqd,bkd->bqk"}> : () -> ()
    %cst_38 = arith.constant dense<0.000000e+00> : vector<2x8x8xf32>
    %81 = tpu.matmul %78, %79, %cst_38 {dimension_numbers = #tpu.dot_dimension_numbers<[2], [2], [1], [1], [0, 0, 0, 1, 1, 1], [0], [0]>} : vector<2x8x8xf32>, vector<2x8x8xf32>, vector<2x8x8xf32> -> vector<2x8x8xf32>
    "tpu.trace_stop"() : () -> ()
    %cst_39 = arith.constant dense<0xFF800000> : vector<2x8xf32>
    %82 = vector.multi_reduction <maximumf>, %81, %cst_39 [2] : vector<2x8x8xf32> to vector<2x8xf32>
    %83 = vector.shape_cast %82 : vector<2x8xf32> to vector<2x8x1xf32>
    %84 = vector.broadcast %83 : vector<2x8x1xf32> to vector<2x8x8xf32>
    %85 = arith.subf %81, %84 : vector<2x8x8xf32>
    %86 = math.exp %85 : vector<2x8x8xf32>
    %cst_40 = arith.constant dense<0.000000e+00> : vector<2x8xf32>
    %87 = vector.multi_reduction <add>, %86, %cst_40 [2] : vector<2x8x8xf32> to vector<2x8xf32>
    %88 = vector.shape_cast %87 : vector<2x8xf32> to vector<2x8x1xf32>
    %89 = tpu.reciprocal %88 : vector<2x8x1xf32> -> vector<2x8x1xf32>
    %90 = vector.broadcast %89 : vector<2x8x1xf32> to vector<2x8x8xf32>
    %91 = arith.mulf %86, %90 : vector<2x8x8xf32>
    "tpu.trace_start"() <{level = 10 : i32, message = "bqk,bkd->bqd"}> : () -> ()
    %cst_41 = arith.constant dense<0.000000e+00> : vector<2x8x8xf32>
    %92 = tpu.matmul %91, %80, %cst_41 {dimension_numbers = #tpu.dot_dimension_numbers<[2], [1], [1], [2], [0, 0, 0, 1, 1, 2], [0], [0]>} : vector<2x8x8xf32>, vector<2x8x8xf32>, vector<2x8x8xf32> -> vector<2x8x8xf32>
    "tpu.trace_stop"() : () -> ()
    %93 = vector.shape_cast %92 : vector<2x8x8xf32> to vector<16x8xf32>
    %c24 = arith.constant 24 : index
    %c0_42 = arith.constant 0 : index
    %94 = vector.load %arg5[%c24, %c0_42] : memref<32x32xf32, #tpu.memory_space<vmem>>, vector<8x32xf32>
    %cst_43 = arith.constant dense<0.000000e+00> : vector<16x32xf32>
    %95 = tpu.matmul %93, %94, %cst_43 {dimension_numbers = #tpu.dot_dimension_numbers<[1], [0], [0], [1], [0, 0, 1, 1], [], []>} : vector<16x8xf32>, vector<8x32xf32>, vector<16x32xf32> -> vector<16x32xf32>
    %96 = arith.addf %77, %95 : vector<16x32xf32>
    %97 = vector.shape_cast %96 : vector<16x32xf32> to vector<2x8x32xf32>
    %c0_44 = arith.constant 0 : index
    %c0_45 = arith.constant 0 : index
    %c0_46 = arith.constant 0 : index
    %98 = vector.load %arg7[%c0_44, %c0_45, %c0_46] : memref<2x8x32xf32, #tpu.memory_space<vmem>>, vector<2x8x32xf32>
    tpu.vector_store %arg7[%c0_44, %c0_45, %c0_46], %97 {strides = array<i32>} : memref<2x8x32xf32, #tpu.memory_space<vmem>>, vector<2x8x32xf32>,
    return
  }
  func.func @transform_0(%arg0: i32) -> (i32, i32, i32) {
    %c0_i32 = arith.constant 0 : i32
    %c0_i32_0 = arith.constant 0 : i32
    %c0_i32_1 = arith.constant 0 : i32
    return %arg0, %c0_i32, %c0_i32_0 : i32, i32, i32
  }
  func.func @transform_1(%arg0: i32) -> (i32, i32, i32) {
    %c0_i32 = arith.constant 0 : i32
    %c0_i32_0 = arith.constant 0 : i32
    %c0_i32_1 = arith.constant 0 : i32
    return %arg0, %c0_i32, %c0_i32_0 : i32, i32, i32
  }
  func.func @transform_2(%arg0: i32) -> (i32, i32, i32) {
    %c0_i32 = arith.constant 0 : i32
    %c0_i32_0 = arith.constant 0 : i32
    %c0_i32_1 = arith.constant 0 : i32
    return %arg0, %c0_i32, %c0_i32_0 : i32, i32, i32
  }
  func.func @transform_3(%arg0: i32) -> (i32, i32, i32) {
    %c0_i32 = arith.constant 0 : i32
    %c0_i32_0 = arith.constant 0 : i32
    %c0_i32_1 = arith.constant 0 : i32
    %c0_i32_2 = arith.constant 0 : i32
    return %c0_i32, %c0_i32_0, %c0_i32_1 : i32, i32, i32
  }
  func.func @transform_4(%arg0: i32) -> (i32, i32) {
    %c0_i32 = arith.constant 0 : i32
    %c0_i32_0 = arith.constant 0 : i32
    %c0_i32_1 = arith.constant 0 : i32
    return %c0_i32, %c0_i32_0 : i32, i32
  }
  func.func @transform_5(%arg0: i32) -> (i32, i32) {
    %c0_i32 = arith.constant 0 : i32
    %c0_i32_0 = arith.constant 0 : i32
    %c0_i32_1 = arith.constant 0 : i32
    return %c0_i32, %c0_i32_0 : i32, i32
  }
  func.func @transform_6(%arg0: i32) -> (i32, i32, i32) {
    %c0_i32 = arith.constant 0 : i32
    %c0_i32_0 = arith.constant 0 : i32
    %c0_i32_1 = arith.constant 0 : i32
    return %arg0, %c0_i32, %c0_i32_0 : i32, i32, i32
  }
}

</mosaic_0001>

<llo_original>
// kernel: tpu_custom_call.1
$region0: #{tpu_custom_call.1}
  #allocation0 [shape = 'u32[]', space=smem, size = 0x4, offset = 0x4, fixed_abs, tag = 'smem constant byte address 0x4 - core index']
  #allocation1 [shape = 'u32[72,128]{1,0:T(1,128)}', space=vmem, size = 0x9000, scoped, tag = 'internal scratch']
  %s0 = inlined_call_operand.hbm [shape: f32[2,8,32], index: 0, kind: input, shape index: {}]
  %s1 = inlined_call_operand.hbm [shape: f32[2,8,32], index: 1, kind: input, shape index: {}]
  %s2 = inlined_call_operand.hbm [shape: f32[2,8,32], index: 2, kind: input, shape index: {}]
  %s3 = inlined_call_operand.hbm [shape: f32[3,32,32], index: 3, kind: input, shape index: {}]
  %s4 = inlined_call_operand.hbm [shape: f32[32,32], index: 4, kind: input, shape index: {}]
  %s5 = inlined_call_operand.vmem [shape: f32[1,32], index: 5, kind: input, shape index: {}]
  %s6 = inlined_call_operand.hbm [shape: f32[2,8,32], index: 6, kind: output, shape index: {}]
  %s7 = sld [smem:[#allocation0]]
  $region54: #{tpu_custom_call.1} parent=0
    _
  %s9 = ssub.s32 1, %s7
  %s10 = scalar_select 0, %s9, %s7
  $region1: #{tpu_custom_call.1} parent=0
    #allocation2 [shape = 'u8[8192]{0}', space=vmem, size = 0x2000, scoped, tag = 'input window, operand 0, single buffered']
    #allocation3 [shape = 's32[1]{0}', space=sflag, size = 0x4, scoped, tag = 'scoped memory for tpu_custom_call.1']
    #allocation4 [shape = 's32[1]{0}', space=sflag, size = 0x4, scoped, tag = 'scoped memory for tpu_custom_call.1']
    #allocation5 [shape = 'u8[8192]{0}', space=vmem, size = 0x2000, scoped, tag = 'input window, operand 1, single buffered']
    #allocation6 [shape = 's32[1]{0}', space=sflag, size = 0x4, scoped, tag = 'scoped memory for tpu_custom_call.1']
    #allocation7 [shape = 'u8[8192]{0}', space=vmem, size = 0x2000, scoped, tag = 'input window, operand 2, single buffered']
    #allocation8 [shape = 'u8[49152]{0}', space=vmem, size = 0xc000, scoped, tag = 'input window, operand 3, single buffered']
    #allocation9 [shape = 's32[1]{0}', space=sflag, size = 0x4, scoped, tag = 'scoped memory for tpu_custom_call.1']
    #allocation10 [shape = 'u8[16384]{0}', space=vmem, size = 0x4000, scoped, tag = 'input window, operand 4, single buffered']
    #allocation11 [shape = 'u8[8192]{0}', space=vmem, size = 0x2000, scoped, tag = 'output window, operand 0, single buffered']
    %11 = vsyncpa [#allocation3], 0
    %12 = vsyncpa [#allocation6], 0
    %13 = vsyncpa [#allocation9], 0
    %14 = vsyncpa [#allocation4], 0
    // Predicated region
    $region2: #{tpu_custom_call.1} parent=1 // pred_check
      _
    $region3: #{tpu_custom_call.1} parent=1 // pred_check_branch
      %16 = sbr.rel (0) target = $region5
    $region4: #{tpu_custom_call.1} parent=1 // pred_region
      %18 = vsyncadd [#allocation3], 0
      %s19 = sshll.u32 %s0, 4
      %s20 = int_to_ptr.hbm [resolvable:$true] %s19
      %s21 = sshll.u32 [#allocation2], 4
      %s22 = int_to_ptr.vmem [resolvable:$true] %s21
      %27 = dma.hbm_to_vmem [thread:$0]  %s20, 256, %s22, [#allocation3], 128, 128, 8
    $region5: #{tpu_custom_call.1} parent=1 // pred_fallthru
      _
    // Predicated region
    $region6: #{tpu_custom_call.1} parent=1 // pred_check
      _
    $region7: #{tpu_custom_call.1} parent=1 // pred_check_branch
      %29 = sbr.rel (0) target = $region9
    $region8: #{tpu_custom_call.1} parent=1 // pred_region
      %31 = vsyncadd [#allocation6], 0
      %s32 = sshll.u32 %s1, 4
      %s33 = int_to_ptr.hbm [resolvable:$true] %s32
      %s34 = sshll.u32 [#allocation5], 4
      %s35 = int_to_ptr.vmem [resolvable:$true] %s34
      %40 = dma.hbm_to_vmem [thread:$0]  %s33, 256, %s35, [#allocation6], 128, 128, 8
    $region9: #{tpu_custom_call.1} parent=1 // pred_fallthru
      _
    // Predicated region
    $region10: #{tpu_custom_call.1} parent=1 // pred_check
      _
    $region11: #{tpu_custom_call.1} parent=1 // pred_check_branch
      %42 = sbr.rel (0) target = $region13
    $region12: #{tpu_custom_call.1} parent=1 // pred_region
      %44 = vsyncadd [#allocation6], 0
      %s45 = sshll.u32 %s2, 4
      %s46 = int_to_ptr.hbm [resolvable:$true] %s45
      %s47 = sshll.u32 [#allocation7], 4
      %s48 = int_to_ptr.vmem [resolvable:$true] %s47
      %53 = dma.hbm_to_vmem [thread:$0]  %s46, 256, %s48, [#allocation6], 128, 128, 8
    $region13: #{tpu_custom_call.1} parent=1 // pred_fallthru
      _
    // Predicated region
    $region14: #{tpu_custom_call.1} parent=1 // pred_check
      _
    $region15: #{tpu_custom_call.1} parent=1 // pred_check_branch
      %55 = sbr.rel (0) target = $region17
    $region16: #{tpu_custom_call.1} parent=1 // pred_region
      %57 = vsyncadd [#allocation9], 0
      %s58 = sshll.u32 %s3, 4
      %s59 = int_to_ptr.hbm [resolvable:$true] %s58
      %s60 = sshll.u32 [#allocation8], 4
      %s61 = int_to_ptr.vmem [resolvable:$true] %s60
      %66 = dma.hbm_to_vmem [thread:$0]  %s59, 1536, %s61, [#allocation9], 128, 128, 8
    $region17: #{tpu_custom_call.1} parent=1 // pred_fallthru
      _
    // Predicated region
    $region18: #{tpu_custom_call.1} parent=1 // pred_check
      _
    $region19: #{tpu_custom_call.1} parent=1 // pred_check_branch
      %68 = sbr.rel (0) target = $region21
    $region20: #{tpu_custom_call.1} parent=1 // pred_region
      %70 = vsyncadd [#allocation9], 0
      %s71 = sshll.u32 %s4, 4
      %s72 = int_to_ptr.hbm [resolvable:$true] %s71
      %s73 = sshll.u32 [#allocation10], 4
      %s74 = int_to_ptr.vmem [resolvable:$true] %s73
      %79 = dma.hbm_to_vmem [thread:$0]  %s72, 512, %s74, [#allocation9], 128, 128, 8
    $region21: #{tpu_custom_call.1} parent=1 // pred_fallthru
      _
    // Predicated region
    $region22: #{tpu_custom_call.1} parent=1 // pred_check
      _
    $region23: #{tpu_custom_call.1} parent=1 // pred_check_branch
      %81 = sbr.rel (0) target = $region25
    $region24: #{tpu_custom_call.1} parent=1 // pred_region
      _
    $region25: #{tpu_custom_call.1} parent=1 // pred_fallthru
      _
    // Predicated region
    $region26: #{tpu_custom_call.1} parent=1 // pred_check
      _
    $region27: #{tpu_custom_call.1} parent=1 // pred_check_branch
      %83 = sbr.rel (0) target = $region29
    $region28: #{tpu_custom_call.1} parent=1 // pred_region
      %85 = dma.done [#allocation3], 256
    $region29: #{tpu_custom_call.1} parent=1 // pred_fallthru
      _
    // Predicated region
    $region30: #{tpu_custom_call.1} parent=1 // pred_check
      _
    $region31: #{tpu_custom_call.1} parent=1 // pred_check_branch
      %87 = sbr.rel (0) target = $region33
    $region32: #{tpu_custom_call.1} parent=1 // pred_region
      %89 = dma.done [#allocation6], 256
    $region33: #{tpu_custom_call.1} parent=1 // pred_fallthru
      _
    // Predicated region
    $region34: #{tpu_custom_call.1} parent=1 // pred_check
      _
    $region35: #{tpu_custom_call.1} parent=1 // pred_check_branch
      %91 = sbr.rel (0) target = $region37
    $region36: #{tpu_custom_call.1} parent=1 // pred_region
      %93 = dma.done [#allocation6], 256
    $region37: #{tpu_custom_call.1} parent=1 // pred_fallthru
      _
    // Predicated region
    $region38: #{tpu_custom_call.1} parent=1 // pred_check
      _
    $region39: #{tpu_custom_call.1} parent=1 // pred_check_branch
      %95 = sbr.rel (0) target = $region41
    $region40: #{tpu_custom_call.1} parent=1 // pred_region
      %97 = dma.done [#allocation9], 1536
    $region41: #{tpu_custom_call.1} parent=1 // pred_fallthru
      _
    // Predicated region
    $region42: #{tpu_custom_call.1} parent=1 // pred_check
      _
    $region43: #{tpu_custom_call.1} parent=1 // pred_check_branch
      %99 = sbr.rel (0) target = $region45
    $region44: #{tpu_custom_call.1} parent=1 // pred_region
      %101 = dma.done [#allocation9], 512
    $region45: #{tpu_custom_call.1} parent=1 // pred_fallthru
      _
    %v102 = vld [vmem:[#allocation2] sm:$0xff]
    %v103 = vld [vmem:[#allocation2 + $0x8] sm:$0xff]
    %v104 = vld [vmem:[#allocation5] sm:$0xff]
    %v105 = vld [vmem:[#allocation5 + $0x8] sm:$0xff]
    %v106 = vld [vmem:[#allocation7] sm:$0xff]
    %v107 = vld [vmem:[#allocation7 + $0x8] sm:$0xff]
    %v108 = vld [vmem:[#allocation8] sm:$0xff]
    %v109 = vld [vmem:[#allocation8 + $0x8] sm:$0xff]
    %v110 = vld [vmem:[#allocation8 + $0x10] sm:$0xff]
    %v111 = vld [vmem:[#allocation8 + $0x18] sm:$0xff]
    %vm112 = vcmask 261120
    %v114 = vsel %vm112, %v102, 0
    %v117 = vsel %vm112, %v103, 0
    %119 = vmatpush.msra.mxu0 0.0
    %120 = vmatpush.msra.mxu0 0.0
    %121 = vmatpush.msra.mxu0 0.0
    %122 = vmatpush.msra.mxu0 0.0
    %123 = vmatpush.msra.mxu0 0.0
    %124 = vmatpush.msra.mxu0 0.0
    %125 = vmatpush.msra.mxu0 0.0
    %126 = vmatpush.msra.mxu0 0.0
    %127 = vmatpush.msra.mxu0 0.0
    %128 = vmatpush.msra.mxu0 0.0
    %129 = vmatpush.msra.mxu0 0.0
    %130 = vmatpush.msra.mxu0 0.0
    %131 = vmatpush.msra.mxu0 %v111
    %132 = vmatpush.msra.mxu0 %v110
    %133 = vmatpush.msra.mxu0 %v109
    %134 = vmatpush.msra.mxu0 %v108
    %135 = vmatmul.f32.gmra.mxu0 %v114
    %v136 = vpop.f32.mrf.mxu0
    %v137 = vadd.f32 0.0, %v136
    %138 = vmatmul.f32.gmra.mxu0 %v117
    %v139 = vpop.f32.mrf.mxu0
    %v140 = vadd.f32 0.0, %v139
    %141 = vdwg.mxu0
    %s142 = scalar_lea.vmem [#allocation8], 32
    %v143 = vld [vmem:[%s142] sm:$0xff]
    %v144 = vld [vmem:[%s142 + $0x8] sm:$0xff]
    %v145 = vld [vmem:[%s142 + $0x10] sm:$0xff]
    %v146 = vld [vmem:[%s142 + $0x18] sm:$0xff]
    %v148 = vsel %vm112, %v104, 0
    %v151 = vsel %vm112, %v105, 0
    %153 = vmatpush.msra.mxu0 0.0
    %154 = vmatpush.msra.mxu0 0.0
    %155 = vmatpush.msra.mxu0 0.0
    %156 = vmatpush.msra.mxu0 0.0
    %157 = vmatpush.msra.mxu0 0.0
    %158 = vmatpush.msra.mxu0 0.0
    %159 = vmatpush.msra.mxu0 0.0
    %160 = vmatpush.msra.mxu0 0.0
    %161 = vmatpush.msra.mxu0 0.0
    %162 = vmatpush.msra.mxu0 0.0
    %163 = vmatpush.msra.mxu0 0.0
    %164 = vmatpush.msra.mxu0 0.0
    %165 = vmatpush.msra.mxu0 %v146
    %166 = vmatpush.msra.mxu0 %v145
    %167 = vmatpush.msra.mxu0 %v144
    %168 = vmatpush.msra.mxu0 %v143
    %169 = vmatmul.f32.gmra.mxu0 %v148
    %v170 = vpop.f32.mrf.mxu0
    %v171 = vadd.f32 0.0, %v170
    %172 = vmatmul.f32.gmra.mxu0 %v151
    %v173 = vpop.f32.mrf.mxu0
    %v174 = vadd.f32 0.0, %v173
    %175 = vdwg.mxu0
    %s176 = scalar_lea.vmem [#allocation8], 64
    %v177 = vld [vmem:[%s176] sm:$0xff]
    %v178 = vld [vmem:[%s176 + $0x8] sm:$0xff]
    %v179 = vld [vmem:[%s176 + $0x10] sm:$0xff]
    %v180 = vld [vmem:[%s176 + $0x18] sm:$0xff]
    %v182 = vsel %vm112, %v106, 0
    %v185 = vsel %vm112, %v107, 0
    %187 = vmatpush.msra.mxu0 0.0
    %188 = vmatpush.msra.mxu0 0.0
    %189 = vmatpush.msra.mxu0 0.0
    %190 = vmatpush.msra.mxu0 0.0
    %191 = vmatpush.msra.mxu0 0.0
    %192 = vmatpush.msra.mxu0 0.0
    %193 = vmatpush.msra.mxu0 0.0
    %194 = vmatpush.msra.mxu0 0.0
    %195 = vmatpush.msra.mxu0 0.0
    %196 = vmatpush.msra.mxu0 0.0
    %197 = vmatpush.msra.mxu0 0.0
    %198 = vmatpush.msra.mxu0 0.0
    %199 = vmatpush.msra.mxu0 %v180
    %200 = vmatpush.msra.mxu0 %v179
    %201 = vmatpush.msra.mxu0 %v178
    %202 = vmatpush.msra.mxu0 %v177
    %203 = vmatmul.f32.gmra.mxu0 %v182
    %v204 = vpop.f32.mrf.mxu0
    %v205 = vadd.f32 0.0, %v204
    %206 = vmatmul.f32.gmra.mxu0 %v185
    %v207 = vpop.f32.mrf.mxu0
    %v208 = vadd.f32 0.0, %v207
    %209 = vdwg.mxu0
    %v210 = vld [vmem:[%s5] sm:$0x1]
    %v212 = vperm.slane %v210, 0
    %vm214 = vcmask 64512
    %v216 = vsel %vm214, %v137, 0
    %v219 = vsel %vm214, %v171, 0
    %221 = vmatpush.xpose.msra.mxu0 0.0
    %222 = vmatpush.xpose.msra.mxu0 0.0
    %223 = vmatpush.xpose.msra.mxu0 0.0
    %224 = vmatpush.xpose.msra.mxu0 0.0
    %225 = vmatpush.xpose.msra.mxu0 0.0
    %226 = vmatpush.xpose.msra.mxu0 0.0
    %227 = vmatpush.xpose.msra.mxu0 0.0
    %228 = vmatpush.xpose.msra.mxu0 0.0
    %229 = vmatpush.xpose.msra.mxu0 0.0
    %230 = vmatpush.xpose.msra.mxu0 0.0
    %231 = vmatpush.xpose.msra.mxu0 0.0
    %232 = vmatpush.xpose.msra.mxu0 0.0
    %233 = vmatpush.xpose.msra.mxu0 0.0
    %234 = vmatpush.xpose.msra.mxu0 0.0
    %235 = vmatpush.xpose.msra.mxu0 0.0
    %236 = vmatpush.xpose.msra.mxu0 %v219
    %237 = vmatmul.f32.gmra.mxu0 %v216
    %v238 = vpop.f32.mrf.mxu0
    %v239 = vadd.f32 0.0, %v238
    %240 = vdwg.mxu0
    %v242 = vsel %vm214, %v140, 0
    %v245 = vsel %vm214, %v174, 0
    %247 = vmatpush.xpose.msra.mxu0 0.0
    %248 = vmatpush.xpose.msra.mxu0 0.0
    %249 = vmatpush.xpose.msra.mxu0 0.0
    %250 = vmatpush.xpose.msra.mxu0 0.0
    %251 = vmatpush.xpose.msra.mxu0 0.0
    %252 = vmatpush.xpose.msra.mxu0 0.0
    %253 = vmatpush.xpose.msra.mxu0 0.0
    %254 = vmatpush.xpose.msra.mxu0 0.0
    %255 = vmatpush.xpose.msra.mxu0 0.0
    %256 = vmatpush.xpose.msra.mxu0 0.0
    %257 = vmatpush.xpose.msra.mxu0 0.0
    %258 = vmatpush.xpose.msra.mxu0 0.0
    %259 = vmatpush.xpose.msra.mxu0 0.0
    %260 = vmatpush.xpose.msra.mxu0 0.0
    %261 = vmatpush.xpose.msra.mxu0 0.0
    %262 = vmatpush.xpose.msra.mxu0 %v245
    %263 = vmatmul.f32.gmra.mxu0 %v242
    %v264 = vpop.f32.mrf.mxu0
    %v265 = vadd.f32 0.0, %v264
    %266 = vdwg.mxu0
    %v267 = vsel %vm214, %v239, -inf
    %268 = vmax.xlane.f32.xlu0 %v267
    %v269 = vpop.xlane.xlu0 %268
    %v270 = vsel %vm214, %v265, -inf
    %271 = vmax.xlane.f32.xlu0 %v270
    %v272 = vpop.xlane.xlu0 %271
    %v273 = vsub.f32 %v239, %v269
    %v274 = vsub.f32 %v265, %v272
    %v275 = vmul.f32 %v273, 1.442695
    %v276 = vpow.pop %v275
    %v277 = vmul.f32 %v274, 1.442695
    %v278 = vpow.pop %v277
    %v279 = vsel %vm214, %v276, 0.0
    %280 = vadd.xlane.f32.xlu0 %v279
    %v281 = vpop.xlane.xlu0 %280
    %v282 = vsel %vm214, %v278, 0.0
    %283 = vadd.xlane.f32.xlu0 %v282
    %v284 = vpop.xlane.xlu0 %283
    %v285 = vrcp.pop %v281
    %v286 = vmul.f32 %v281, %v285
    %v287 = vsub.f32 1.0, %v286
    %v288 = vmul.f32 %v285, %v287
    %v289 = vadd.f32 %v285, %v288
    %vm290 = vweird.f32 %v281
    %vm291 = vweird.f32 %v285
    %vm292 = vmor %vm290, %vm291
    %v293 = vsel %vm292, %v285, %v289
    %v294 = vand.u32 2147483647, %v281
    %vm295 = vcmp.eq.f32.partialorder %v294, 8.507059e+37
    %v296 = vand.u32 %v281, 2147483648
    %v297 = vor.u32 1.1754944e-38, %v296
    %v298 = vsel %vm295, %v297, %v293
    %v299 = vrcp.pop %v284
    %v300 = vmul.f32 %v284, %v299
    %v301 = vsub.f32 1.0, %v300
    %v302 = vmul.f32 %v299, %v301
    %v303 = vadd.f32 %v299, %v302
    %vm304 = vweird.f32 %v284
    %vm305 = vweird.f32 %v299
    %vm306 = vmor %vm304, %vm305
    %v307 = vsel %vm306, %v299, %v303
    %v308 = vand.u32 2147483647, %v284
    %vm309 = vcmp.eq.f32.partialorder %v308, 8.507059e+37
    %v310 = vand.u32 %v284, 2147483648
    %v311 = vor.u32 1.1754944e-38, %v310
    %v312 = vsel %vm309, %v311, %v307
    %v313 = vmul.f32 %v276, %v298
    %v314 = vmul.f32 %v278, %v312
    %v316 = vsel %vm214, %v313, 0
    %318 = vmatpush.msra.mxu0 0.0
    %319 = vmatpush.msra.mxu0 0.0
    %320 = vmatpush.msra.mxu0 0.0
    %321 = vmatpush.msra.mxu0 0.0
    %322 = vmatpush.msra.mxu0 0.0
    %323 = vmatpush.msra.mxu0 0.0
    %324 = vmatpush.msra.mxu0 0.0
    %325 = vmatpush.msra.mxu0 0.0
    %326 = vmatpush.msra.mxu0 0.0
    %327 = vmatpush.msra.mxu0 0.0
    %328 = vmatpush.msra.mxu0 0.0
    %329 = vmatpush.msra.mxu0 0.0
    %330 = vmatpush.msra.mxu0 0.0
    %331 = vmatpush.msra.mxu0 0.0
    %332 = vmatpush.msra.mxu0 0.0
    %333 = vmatpush.msra.mxu0 %v205
    %334 = vmatmul.f32.gmra.mxu0 %v316
    %v335 = vpop.f32.mrf.mxu0
    %v336 = vadd.f32 0.0, %v335
    %337 = vdwg.mxu0
    %v339 = vsel %vm214, %v314, 0
    %341 = vmatpush.msra.mxu0 0.0
    %342 = vmatpush.msra.mxu0 0.0
    %343 = vmatpush.msra.mxu0 0.0
    %344 = vmatpush.msra.mxu0 0.0
    %345 = vmatpush.msra.mxu0 0.0
    %346 = vmatpush.msra.mxu0 0.0
    %347 = vmatpush.msra.mxu0 0.0
    %348 = vmatpush.msra.mxu0 0.0
    %349 = vmatpush.msra.mxu0 0.0
    %350 = vmatpush.msra.mxu0 0.0
    %351 = vmatpush.msra.mxu0 0.0
    %352 = vmatpush.msra.mxu0 0.0
    %353 = vmatpush.msra.mxu0 0.0
    %354 = vmatpush.msra.mxu0 0.0
    %355 = vmatpush.msra.mxu0 0.0
    %356 = vmatpush.msra.mxu0 %v208
    %357 = vmatmul.f32.gmra.mxu0 %v339
    %v358 = vpop.f32.mrf.mxu0
    %v359 = vadd.f32 0.0, %v358
    %360 = vdwg.mxu0
    %v361 = vld [vmem:[#allocation10] sm:$0xff]
    %v363 = vsel %vm214, %v336, 0
    %v366 = vsel %vm214, %v359, 0
    %368 = vmatpush.msra.mxu0 0.0
    %369 = vmatpush.msra.mxu0 0.0
    %370 = vmatpush.msra.mxu0 0.0
    %371 = vmatpush.msra.mxu0 0.0
    %372 = vmatpush.msra.mxu0 0.0
    %373 = vmatpush.msra.mxu0 0.0
    %374 = vmatpush.msra.mxu0 0.0
    %375 = vmatpush.msra.mxu0 0.0
    %376 = vmatpush.msra.mxu0 0.0
    %377 = vmatpush.msra.mxu0 0.0
    %378 = vmatpush.msra.mxu0 0.0
    %379 = vmatpush.msra.mxu0 0.0
    %380 = vmatpush.msra.mxu0 0.0
    %381 = vmatpush.msra.mxu0 0.0
    %382 = vmatpush.msra.mxu0 0.0
    %383 = vmatpush.msra.mxu0 %v361
    %384 = vmatmul.f32.gmra.mxu0 %v363
    %v385 = vpop.f32.mrf.mxu0
    %v386 = vadd.f32 0.0, %v385
    %387 = vmatmul.f32.gmra.mxu0 %v366
    %v388 = vpop.f32.mrf.mxu0
    %v389 = vadd.f32 0.0, %v388
    %390 = vdwg.mxu0
    %v391 = vadd.f32 %v212, %v386
    %v392 = vadd.f32 %v212, %v389
    %393 = vrot.lane.b32.xlu0 %v137, 120
    %v394 = vpop.permute.xlu0 %393
    %395 = vrot.lane.b32.xlu0 %v171, 120
    %v396 = vpop.permute.xlu0 %395
    %v397 = vsel %vm214, %v394, 0
    %v399 = vsel %vm214, %v396, 0
    %401 = vmatpush.xpose.msra.mxu0 0.0
    %402 = vmatpush.xpose.msra.mxu0 0.0
    %403 = vmatpush.xpose.msra.mxu0 0.0
    %404 = vmatpush.xpose.msra.mxu0 0.0
    %405 = vmatpush.xpose.msra.mxu0 0.0
    %406 = vmatpush.xpose.msra.mxu0 0.0
    %407 = vmatpush.xpose.msra.mxu0 0.0
    %408 = vmatpush.xpose.msra.mxu0 0.0
    %409 = vmatpush.xpose.msra.mxu0 0.0
    %410 = vmatpush.xpose.msra.mxu0 0.0
    %411 = vmatpush.xpose.msra.mxu0 0.0
    %412 = vmatpush.xpose.msra.mxu0 0.0
    %413 = vmatpush.xpose.msra.mxu0 0.0
    %414 = vmatpush.xpose.msra.mxu0 0.0
    %415 = vmatpush.xpose.msra.mxu0 0.0
    %416 = vmatpush.xpose.msra.mxu0 %v399
    %417 = vmatmul.f32.gmra.mxu0 %v397
    %v418 = vpop.f32.mrf.mxu0
    %v419 = vadd.f32 0.0, %v418
    %420 = vdwg.mxu0
    %421 = vrot.lane.b32.xlu0 %v140, 120
    %v422 = vpop.permute.xlu0 %421
    %423 = vrot.lane.b32.xlu0 %v174, 120
    %v424 = vpop.permute.xlu0 %423
    %v425 = vsel %vm214, %v422, 0
    %v427 = vsel %vm214, %v424, 0
    %429 = vmatpush.xpose.msra.mxu0 0.0
    %430 = vmatpush.xpose.msra.mxu0 0.0
    %431 = vmatpush.xpose.msra.mxu0 0.0
    %432 = vmatpush.xpose.msra.mxu0 0.0
    %433 = vmatpush.xpose.msra.mxu0 0.0
    %434 = vmatpush.xpose.msra.mxu0 0.0
    %435 = vmatpush.xpose.msra.mxu0 0.0
    %436 = vmatpush.xpose.msra.mxu0 0.0
    %437 = vmatpush.xpose.msra.mxu0 0.0
    %438 = vmatpush.xpose.msra.mxu0 0.0
    %439 = vmatpush.xpose.msra.mxu0 0.0
    %440 = vmatpush.xpose.msra.mxu0 0.0
    %441 = vmatpush.xpose.msra.mxu0 0.0
    %442 = vmatpush.xpose.msra.mxu0 0.0
    %443 = vmatpush.xpose.msra.mxu0 0.0
    %444 = vmatpush.xpose.msra.mxu0 %v427
    %445 = vmatmul.f32.gmra.mxu0 %v425
    %v446 = vpop.f32.mrf.mxu0
    %v447 = vadd.f32 0.0, %v446
    %448 = vdwg.mxu0
    %v449 = vsel %vm214, %v419, -inf
    %450 = vmax.xlane.f32.xlu0 %v449
    %v451 = vpop.xlane.xlu0 %450
    %v452 = vsel %vm214, %v447, -inf
    %453 = vmax.xlane.f32.xlu0 %v452
    %v454 = vpop.xlane.xlu0 %453
    %v455 = vsub.f32 %v419, %v451
    %v456 = vsub.f32 %v447, %v454
    %v457 = vmul.f32 %v455, 1.442695
    %v458 = vpow.pop %v457
    %v459 = vmul.f32 %v456, 1.442695
    %v460 = vpow.pop %v459
    %v461 = vsel %vm214, %v458, 0.0
    %462 = vadd.xlane.f32.xlu0 %v461
    %v463 = vpop.xlane.xlu0 %462
    %v464 = vsel %vm214, %v460, 0.0
    %465 = vadd.xlane.f32.xlu0 %v464
    %v466 = vpop.xlane.xlu0 %465
    %v467 = vrcp.pop %v463
    %v468 = vmul.f32 %v463, %v467
    %v469 = vsub.f32 1.0, %v468
    %v470 = vmul.f32 %v467, %v469
    %v471 = vadd.f32 %v467, %v470
    %vm472 = vweird.f32 %v463
    %vm473 = vweird.f32 %v467
    %vm474 = vmor %vm472, %vm473
    %v475 = vsel %vm474, %v467, %v471
    %v476 = vand.u32 2147483647, %v463
    %vm477 = vcmp.eq.f32.partialorder %v476, 8.507059e+37
    %v478 = vand.u32 %v463, 2147483648
    %v479 = vor.u32 1.1754944e-38, %v478
    %v480 = vsel %vm477, %v479, %v475
    %v481 = vrcp.pop %v466
    %v482 = vmul.f32 %v466, %v481
    %v483 = vsub.f32 1.0, %v482
    %v484 = vmul.f32 %v481, %v483
    %v485 = vadd.f32 %v481, %v484
    %vm486 = vweird.f32 %v466
    %vm487 = vweird.f32 %v481
    %vm488 = vmor %vm486, %vm487
    %v489 = vsel %vm488, %v481, %v485
    %v490 = vand.u32 2147483647, %v466
    %vm491 = vcmp.eq.f32.partialorder %v490, 8.507059e+37
    %v492 = vand.u32 %v466, 2147483648
    %v493 = vor.u32 1.1754944e-38, %v492
    %v494 = vsel %vm491, %v493, %v489
    %v495 = vmul.f32 %v458, %v480
    %v496 = vmul.f32 %v460, %v494
    %498 = vrot.lane.b32.xlu0 %v205, 120
    %v499 = vpop.permute.xlu0 %498
    %v502 = vsel %vm214, %v495, 0
    %504 = vmatpush.msra.mxu0 0.0
    %505 = vmatpush.msra.mxu0 0.0
    %506 = vmatpush.msra.mxu0 0.0
    %507 = vmatpush.msra.mxu0 0.0
    %508 = vmatpush.msra.mxu0 0.0
    %509 = vmatpush.msra.mxu0 0.0
    %510 = vmatpush.msra.mxu0 0.0
    %511 = vmatpush.msra.mxu0 0.0
    %512 = vmatpush.msra.mxu0 0.0
    %513 = vmatpush.msra.mxu0 0.0
    %514 = vmatpush.msra.mxu0 0.0
    %515 = vmatpush.msra.mxu0 0.0
    %516 = vmatpush.msra.mxu0 0.0
    %517 = vmatpush.msra.mxu0 0.0
    %518 = vmatpush.msra.mxu0 0.0
    %519 = vmatpush.msra.mxu0 %v499
    %520 = vmatmul.f32.gmra.mxu0 %v502
    %v521 = vpop.f32.mrf.mxu0
    %v522 = vadd.f32 0.0, %v521
    %523 = vdwg.mxu0
    %525 = vrot.lane.b32.xlu0 %v208, 120
    %v526 = vpop.permute.xlu0 %525
    %v529 = vsel %vm214, %v496, 0
    %531 = vmatpush.msra.mxu0 0.0
    %532 = vmatpush.msra.mxu0 0.0
    %533 = vmatpush.msra.mxu0 0.0
    %534 = vmatpush.msra.mxu0 0.0
    %535 = vmatpush.msra.mxu0 0.0
    %536 = vmatpush.msra.mxu0 0.0
    %537 = vmatpush.msra.mxu0 0.0
    %538 = vmatpush.msra.mxu0 0.0
    %539 = vmatpush.msra.mxu0 0.0
    %540 = vmatpush.msra.mxu0 0.0
    %541 = vmatpush.msra.mxu0 0.0
    %542 = vmatpush.msra.mxu0 0.0
    %543 = vmatpush.msra.mxu0 0.0
    %544 = vmatpush.msra.mxu0 0.0
    %545 = vmatpush.msra.mxu0 0.0
    %546 = vmatpush.msra.mxu0 %v526
    %547 = vmatmul.f32.gmra.mxu0 %v529
    %v548 = vpop.f32.mrf.mxu0
    %v549 = vadd.f32 0.0, %v548
    %550 = vdwg.mxu0
    %v551 = vld [vmem:[#allocation10 + $0x8] sm:$0xff]
    %v553 = vsel %vm214, %v522, 0
    %v556 = vsel %vm214, %v549, 0
    %558 = vmatpush.msra.mxu0 0.0
    %559 = vmatpush.msra.mxu0 0.0
    %560 = vmatpush.msra.mxu0 0.0
    %561 = vmatpush.msra.mxu0 0.0
    %562 = vmatpush.msra.mxu0 0.0
    %563 = vmatpush.msra.mxu0 0.0
    %564 = vmatpush.msra.mxu0 0.0
    %565 = vmatpush.msra.mxu0 0.0
    %566 = vmatpush.msra.mxu0 0.0
    %567 = vmatpush.msra.mxu0 0.0
    %568 = vmatpush.msra.mxu0 0.0
    %569 = vmatpush.msra.mxu0 0.0
    %570 = vmatpush.msra.mxu0 0.0
    %571 = vmatpush.msra.mxu0 0.0
    %572 = vmatpush.msra.mxu0 0.0
    %573 = vmatpush.msra.mxu0 %v551
    %574 = vmatmul.f32.gmra.mxu0 %v553
    %v575 = vpop.f32.mrf.mxu0
    %v576 = vadd.f32 0.0, %v575
    %577 = vmatmul.f32.gmra.mxu0 %v556
    %v578 = vpop.f32.mrf.mxu0
    %v579 = vadd.f32 0.0, %v578
    %580 = vdwg.mxu0
    %v581 = vadd.f32 %v391, %v576
    %v582 = vadd.f32 %v392, %v579
    %583 = vrot.lane.b32.xlu0 %v137, 112
    %v584 = vpop.permute.xlu0 %583
    %585 = vrot.lane.b32.xlu0 %v171, 112
    %v586 = vpop.permute.xlu0 %585
    %v587 = vsel %vm214, %v584, 0
    %v589 = vsel %vm214, %v586, 0
    %591 = vmatpush.xpose.msra.mxu0 0.0
    %592 = vmatpush.xpose.msra.mxu0 0.0
    %593 = vmatpush.xpose.msra.mxu0 0.0
    %594 = vmatpush.xpose.msra.mxu0 0.0
    %595 = vmatpush.xpose.msra.mxu0 0.0
    %596 = vmatpush.xpose.msra.mxu0 0.0
    %597 = vmatpush.xpose.msra.mxu0 0.0
    %598 = vmatpush.xpose.msra.mxu0 0.0
    %599 = vmatpush.xpose.msra.mxu0 0.0
    %600 = vmatpush.xpose.msra.mxu0 0.0
    %601 = vmatpush.xpose.msra.mxu0 0.0
    %602 = vmatpush.xpose.msra.mxu0 0.0
    %603 = vmatpush.xpose.msra.mxu0 0.0
    %604 = vmatpush.xpose.msra.mxu0 0.0
    %605 = vmatpush.xpose.msra.mxu0 0.0
    %606 = vmatpush.xpose.msra.mxu0 %v589
    %607 = vmatmul.f32.gmra.mxu0 %v587
    %v608 = vpop.f32.mrf.mxu0
    %v609 = vadd.f32 0.0, %v608
    %610 = vdwg.mxu0
    %611 = vrot.lane.b32.xlu0 %v140, 112
    %v612 = vpop.permute.xlu0 %611
    %613 = vrot.lane.b32.xlu0 %v174, 112
    %v614 = vpop.permute.xlu0 %613
    %v615 = vsel %vm214, %v612, 0
    %v617 = vsel %vm214, %v614, 0
    %619 = vmatpush.xpose.msra.mxu0 0.0
    %620 = vmatpush.xpose.msra.mxu0 0.0
    %621 = vmatpush.xpose.msra.mxu0 0.0
    %622 = vmatpush.xpose.msra.mxu0 0.0
    %623 = vmatpush.xpose.msra.mxu0 0.0
    %624 = vmatpush.xpose.msra.mxu0 0.0
    %625 = vmatpush.xpose.msra.mxu0 0.0
    %626 = vmatpush.xpose.msra.mxu0 0.0
    %627 = vmatpush.xpose.msra.mxu0 0.0
    %628 = vmatpush.xpose.msra.mxu0 0.0
    %629 = vmatpush.xpose.msra.mxu0 0.0
    %630 = vmatpush.xpose.msra.mxu0 0.0
    %631 = vmatpush.xpose.msra.mxu0 0.0
    %632 = vmatpush.xpose.msra.mxu0 0.0
    %633 = vmatpush.xpose.msra.mxu0 0.0
    %634 = vmatpush.xpose.msra.mxu0 %v617
    %635 = vmatmul.f32.gmra.mxu0 %v615
    %v636 = vpop.f32.mrf.mxu0
    %v637 = vadd.f32 0.0, %v636
    %638 = vdwg.mxu0
    %v639 = vsel %vm214, %v609, -inf
    %640 = vmax.xlane.f32.xlu0 %v639
    %v641 = vpop.xlane.xlu0 %640
    %v642 = vsel %vm214, %v637, -inf
    %643 = vmax.xlane.f32.xlu0 %v642
    %v644 = vpop.xlane.xlu0 %643
    %v645 = vsub.f32 %v609, %v641
    %v646 = vsub.f32 %v637, %v644
    %v647 = vmul.f32 %v645, 1.442695
    %v648 = vpow.pop %v647
    %v649 = vmul.f32 %v646, 1.442695
    %v650 = vpow.pop %v649
    %v651 = vsel %vm214, %v648, 0.0
    %652 = vadd.xlane.f32.xlu0 %v651
    %v653 = vpop.xlane.xlu0 %652
    %v654 = vsel %vm214, %v650, 0.0
    %655 = vadd.xlane.f32.xlu0 %v654
    %v656 = vpop.xlane.xlu0 %655
    %v657 = vrcp.pop %v653
    %v658 = vmul.f32 %v653, %v657
    %v659 = vsub.f32 1.0, %v658
    %v660 = vmul.f32 %v657, %v659
    %v661 = vadd.f32 %v657, %v660
    %vm662 = vweird.f32 %v653
    %vm663 = vweird.f32 %v657
    %vm664 = vmor %vm662, %vm663
    %v665 = vsel %vm664, %v657, %v661
    %v666 = vand.u32 2147483647, %v653
    %vm667 = vcmp.eq.f32.partialorder %v666, 8.507059e+37
    %v668 = vand.u32 %v653, 2147483648
    %v669 = vor.u32 1.1754944e-38, %v668
    %v670 = vsel %vm667, %v669, %v665
    %v671 = vrcp.pop %v656
    %v672 = vmul.f32 %v656, %v671
    %v673 = vsub.f32 1.0, %v672
    %v674 = vmul.f32 %v671, %v673
    %v675 = vadd.f32 %v671, %v674
    %vm676 = vweird.f32 %v656
    %vm677 = vweird.f32 %v671
    %vm678 = vmor %vm676, %vm677
    %v679 = vsel %vm678, %v671, %v675
    %v680 = vand.u32 2147483647, %v656
    %vm681 = vcmp.eq.f32.partialorder %v680, 8.507059e+37
    %v682 = vand.u32 %v656, 2147483648
    %v683 = vor.u32 1.1754944e-38, %v682
    %v684 = vsel %vm681, %v683, %v679
    %v685 = vmul.f32 %v648, %v670
    %v686 = vmul.f32 %v650, %v684
    %687 = vrot.lane.b32.xlu0 %v205, 112
    %v688 = vpop.permute.xlu0 %687
    %v691 = vsel %vm214, %v685, 0
    %693 = vmatpush.msra.mxu0 0.0
    %694 = vmatpush.msra.mxu0 0.0
    %695 = vmatpush.msra.mxu0 0.0
    %696 = vmatpush.msra.mxu0 0.0
    %697 = vmatpush.msra.mxu0 0.0
    %698 = vmatpush.msra.mxu0 0.0
    %699 = vmatpush.msra.mxu0 0.0
    %700 = vmatpush.msra.mxu0 0.0
    %701 = vmatpush.msra.mxu0 0.0
    %702 = vmatpush.msra.mxu0 0.0
    %703 = vmatpush.msra.mxu0 0.0
    %704 = vmatpush.msra.mxu0 0.0
    %705 = vmatpush.msra.mxu0 0.0
    %706 = vmatpush.msra.mxu0 0.0
    %707 = vmatpush.msra.mxu0 0.0
    %708 = vmatpush.msra.mxu0 %v688
    %709 = vmatmul.f32.gmra.mxu0 %v691
    %v710 = vpop.f32.mrf.mxu0
    %v711 = vadd.f32 0.0, %v710
    %712 = vdwg.mxu0
    %713 = vrot.lane.b32.xlu0 %v208, 112
    %v714 = vpop.permute.xlu0 %713
    %v717 = vsel %vm214, %v686, 0
    %719 = vmatpush.msra.mxu0 0.0
    %720 = vmatpush.msra.mxu0 0.0
    %721 = vmatpush.msra.mxu0 0.0
    %722 = vmatpush.msra.mxu0 0.0
    %723 = vmatpush.msra.mxu0 0.0
    %724 = vmatpush.msra.mxu0 0.0
    %725 = vmatpush.msra.mxu0 0.0
    %726 = vmatpush.msra.mxu0 0.0
    %727 = vmatpush.msra.mxu0 0.0
    %728 = vmatpush.msra.mxu0 0.0
    %729 = vmatpush.msra.mxu0 0.0
    %730 = vmatpush.msra.mxu0 0.0
    %731 = vmatpush.msra.mxu0 0.0
    %732 = vmatpush.msra.mxu0 0.0
    %733 = vmatpush.msra.mxu0 0.0
    %734 = vmatpush.msra.mxu0 %v714
    %735 = vmatmul.f32.gmra.mxu0 %v717
    %v736 = vpop.f32.mrf.mxu0
    %v737 = vadd.f32 0.0, %v736
    %738 = vdwg.mxu0
    %v739 = vld [vmem:[#allocation10 + $0x10] sm:$0xff]
    %v741 = vsel %vm214, %v711, 0
    %v744 = vsel %vm214, %v737, 0
    %746 = vmatpush.msra.mxu0 0.0
    %747 = vmatpush.msra.mxu0 0.0
    %748 = vmatpush.msra.mxu0 0.0
    %749 = vmatpush.msra.mxu0 0.0
    %750 = vmatpush.msra.mxu0 0.0
    %751 = vmatpush.msra.mxu0 0.0
    %752 = vmatpush.msra.mxu0 0.0
    %753 = vmatpush.msra.mxu0 0.0
    %754 = vmatpush.msra.mxu0 0.0
    %755 = vmatpush.msra.mxu0 0.0
    %756 = vmatpush.msra.mxu0 0.0
    %757 = vmatpush.msra.mxu0 0.0
    %758 = vmatpush.msra.mxu0 0.0
    %759 = vmatpush.msra.mxu0 0.0
    %760 = vmatpush.msra.mxu0 0.0
    %761 = vmatpush.msra.mxu0 %v739
    %762 = vmatmul.f32.gmra.mxu0 %v741
    %v763 = vpop.f32.mrf.mxu0
    %v764 = vadd.f32 0.0, %v763
    %765 = vmatmul.f32.gmra.mxu0 %v744
    %v766 = vpop.f32.mrf.mxu0
    %v767 = vadd.f32 0.0, %v766
    %768 = vdwg.mxu0
    %v769 = vadd.f32 %v581, %v764
    %v770 = vadd.f32 %v582, %v767
    %771 = vrot.lane.b32.xlu0 %v137, 104
    %v772 = vpop.permute.xlu0 %771
    %773 = vrot.lane.b32.xlu0 %v171, 104
    %v774 = vpop.permute.xlu0 %773
    %v775 = vsel %vm214, %v772, 0
    %v777 = vsel %vm214, %v774, 0
    %779 = vmatpush.xpose.msra.mxu0 0.0
    %780 = vmatpush.xpose.msra.mxu0 0.0
    %781 = vmatpush.xpose.msra.mxu0 0.0
    %782 = vmatpush.xpose.msra.mxu0 0.0
    %783 = vmatpush.xpose.msra.mxu0 0.0
    %784 = vmatpush.xpose.msra.mxu0 0.0
    %785 = vmatpush.xpose.msra.mxu0 0.0
    %786 = vmatpush.xpose.msra.mxu0 0.0
    %787 = vmatpush.xpose.msra.mxu0 0.0
    %788 = vmatpush.xpose.msra.mxu0 0.0
    %789 = vmatpush.xpose.msra.mxu0 0.0
    %790 = vmatpush.xpose.msra.mxu0 0.0
    %791 = vmatpush.xpose.msra.mxu0 0.0
    %792 = vmatpush.xpose.msra.mxu0 0.0
    %793 = vmatpush.xpose.msra.mxu0 0.0
    %794 = vmatpush.xpose.msra.mxu0 %v777
    %795 = vmatmul.f32.gmra.mxu0 %v775
    %v796 = vpop.f32.mrf.mxu0
    %v797 = vadd.f32 0.0, %v796
    %798 = vdwg.mxu0
    %799 = vrot.lane.b32.xlu0 %v140, 104
    %v800 = vpop.permute.xlu0 %799
    %801 = vrot.lane.b32.xlu0 %v174, 104
    %v802 = vpop.permute.xlu0 %801
    %v803 = vsel %vm214, %v800, 0
    %v805 = vsel %vm214, %v802, 0
    %807 = vmatpush.xpose.msra.mxu0 0.0
    %808 = vmatpush.xpose.msra.mxu0 0.0
    %809 = vmatpush.xpose.msra.mxu0 0.0
    %810 = vmatpush.xpose.msra.mxu0 0.0
    %811 = vmatpush.xpose.msra.mxu0 0.0
    %812 = vmatpush.xpose.msra.mxu0 0.0
    %813 = vmatpush.xpose.msra.mxu0 0.0
    %814 = vmatpush.xpose.msra.mxu0 0.0
    %815 = vmatpush.xpose.msra.mxu0 0.0
    %816 = vmatpush.xpose.msra.mxu0 0.0
    %817 = vmatpush.xpose.msra.mxu0 0.0
    %818 = vmatpush.xpose.msra.mxu0 0.0
    %819 = vmatpush.xpose.msra.mxu0 0.0
    %820 = vmatpush.xpose.msra.mxu0 0.0
    %821 = vmatpush.xpose.msra.mxu0 0.0
    %822 = vmatpush.xpose.msra.mxu0 %v805
    %823 = vmatmul.f32.gmra.mxu0 %v803
    %v824 = vpop.f32.mrf.mxu0
    %v825 = vadd.f32 0.0, %v824
    %826 = vdwg.mxu0
    %v827 = vsel %vm214, %v797, -inf
    %828 = vmax.xlane.f32.xlu0 %v827
    %v829 = vpop.xlane.xlu0 %828
    %v830 = vsel %vm214, %v825, -inf
    %831 = vmax.xlane.f32.xlu0 %v830
    %v832 = vpop.xlane.xlu0 %831
    %v833 = vsub.f32 %v797, %v829
    %v834 = vsub.f32 %v825, %v832
    %v835 = vmul.f32 %v833, 1.442695
    %v836 = vpow.pop %v835
    %v837 = vmul.f32 %v834, 1.442695
    %v838 = vpow.pop %v837
    %v839 = vsel %vm214, %v836, 0.0
    %840 = vadd.xlane.f32.xlu0 %v839
    %v841 = vpop.xlane.xlu0 %840
    %v842 = vsel %vm214, %v838, 0.0
    %843 = vadd.xlane.f32.xlu0 %v842
    %v844 = vpop.xlane.xlu0 %843
    %v845 = vrcp.pop %v841
    %v846 = vmul.f32 %v841, %v845
    %v847 = vsub.f32 1.0, %v846
    %v848 = vmul.f32 %v845, %v847
    %v849 = vadd.f32 %v845, %v848
    %vm850 = vweird.f32 %v841
    %vm851 = vweird.f32 %v845
    %vm852 = vmor %vm850, %vm851
    %v853 = vsel %vm852, %v845, %v849
    %v854 = vand.u32 2147483647, %v841
    %vm855 = vcmp.eq.f32.partialorder %v854, 8.507059e+37
    %v856 = vand.u32 %v841, 2147483648
    %v857 = vor.u32 1.1754944e-38, %v856
    %v858 = vsel %vm855, %v857, %v853
    %v859 = vrcp.pop %v844
    %v860 = vmul.f32 %v844, %v859
    %v861 = vsub.f32 1.0, %v860
    %v862 = vmul.f32 %v859, %v861
    %v863 = vadd.f32 %v859, %v862
    %vm864 = vweird.f32 %v844
    %vm865 = vweird.f32 %v859
    %vm866 = vmor %vm864, %vm865
    %v867 = vsel %vm866, %v859, %v863
    %v868 = vand.u32 2147483647, %v844
    %vm869 = vcmp.eq.f32.partialorder %v868, 8.507059e+37
    %v870 = vand.u32 %v844, 2147483648
    %v871 = vor.u32 1.1754944e-38, %v870
    %v872 = vsel %vm869, %v871, %v867
    %v873 = vmul.f32 %v836, %v858
    %v874 = vmul.f32 %v838, %v872
    %875 = vrot.lane.b32.xlu0 %v205, 104
    %v876 = vpop.permute.xlu0 %875
    %v879 = vsel %vm214, %v873, 0
    %881 = vmatpush.msra.mxu0 0.0
    %882 = vmatpush.msra.mxu0 0.0
    %883 = vmatpush.msra.mxu0 0.0
    %884 = vmatpush.msra.mxu0 0.0
    %885 = vmatpush.msra.mxu0 0.0
    %886 = vmatpush.msra.mxu0 0.0
    %887 = vmatpush.msra.mxu0 0.0
    %888 = vmatpush.msra.mxu0 0.0
    %889 = vmatpush.msra.mxu0 0.0
    %890 = vmatpush.msra.mxu0 0.0
    %891 = vmatpush.msra.mxu0 0.0
    %892 = vmatpush.msra.mxu0 0.0
    %893 = vmatpush.msra.mxu0 0.0
    %894 = vmatpush.msra.mxu0 0.0
    %895 = vmatpush.msra.mxu0 0.0
    %896 = vmatpush.msra.mxu0 %v876
    %897 = vmatmul.f32.gmra.mxu0 %v879
    %v898 = vpop.f32.mrf.mxu0
    %v899 = vadd.f32 0.0, %v898
    %900 = vdwg.mxu0
    %901 = vrot.lane.b32.xlu0 %v208, 104
    %v902 = vpop.permute.xlu0 %901
    %v905 = vsel %vm214, %v874, 0
    %907 = vmatpush.msra.mxu0 0.0
    %908 = vmatpush.msra.mxu0 0.0
    %909 = vmatpush.msra.mxu0 0.0
    %910 = vmatpush.msra.mxu0 0.0
    %911 = vmatpush.msra.mxu0 0.0
    %912 = vmatpush.msra.mxu0 0.0
    %913 = vmatpush.msra.mxu0 0.0
    %914 = vmatpush.msra.mxu0 0.0
    %915 = vmatpush.msra.mxu0 0.0
    %916 = vmatpush.msra.mxu0 0.0
    %917 = vmatpush.msra.mxu0 0.0
    %918 = vmatpush.msra.mxu0 0.0
    %919 = vmatpush.msra.mxu0 0.0
    %920 = vmatpush.msra.mxu0 0.0
    %921 = vmatpush.msra.mxu0 0.0
    %922 = vmatpush.msra.mxu0 %v902
    %923 = vmatmul.f32.gmra.mxu0 %v905
    %v924 = vpop.f32.mrf.mxu0
    %v925 = vadd.f32 0.0, %v924
    %926 = vdwg.mxu0
    %v927 = vld [vmem:[#allocation10 + $0x18] sm:$0xff]
    %v929 = vsel %vm214, %v899, 0
    %v932 = vsel %vm214, %v925, 0
    %934 = vmatpush.msra.mxu0 0.0
    %935 = vmatpush.msra.mxu0 0.0
    %936 = vmatpush.msra.mxu0 0.0
    %937 = vmatpush.msra.mxu0 0.0
    %938 = vmatpush.msra.mxu0 0.0
    %939 = vmatpush.msra.mxu0 0.0
    %940 = vmatpush.msra.mxu0 0.0
    %941 = vmatpush.msra.mxu0 0.0
    %942 = vmatpush.msra.mxu0 0.0
    %943 = vmatpush.msra.mxu0 0.0
    %944 = vmatpush.msra.mxu0 0.0
    %945 = vmatpush.msra.mxu0 0.0
    %946 = vmatpush.msra.mxu0 0.0
    %947 = vmatpush.msra.mxu0 0.0
    %948 = vmatpush.msra.mxu0 0.0
    %949 = vmatpush.msra.mxu0 %v927
    %950 = vmatmul.f32.gmra.mxu0 %v929
    %v951 = vpop.f32.mrf.mxu0
    %v952 = vadd.f32 0.0, %v951
    %953 = vmatmul.f32.gmra.mxu0 %v932
    %v954 = vpop.f32.mrf.mxu0
    %v955 = vadd.f32 0.0, %v954
    %956 = vdwg.mxu0
    %v957 = vadd.f32 %v769, %v952
    %v958 = vadd.f32 %v770, %v955
    %959 = vst.msk [vmem:[#allocation11] sm:$0xff] %vm112, %v957
    %960 = vst.msk [vmem:[#allocation11 + $0x8] sm:$0xff] %vm112, %v958
    // Predicated region
    $region46: #{tpu_custom_call.1} parent=1 // pred_check
      _
    $region47: #{tpu_custom_call.1} parent=1 // pred_check_branch
      %962 = sbr.rel (0) target = $region49
    $region48: #{tpu_custom_call.1} parent=1 // pred_region
      %964 = vsyncadd [#allocation4], 0
      %s965 = sshll.u32 [#allocation11], 4
      %s966 = int_to_ptr.vmem [resolvable:$true] %s965
      %s967 = sshll.u32 %s6, 4
      %s968 = int_to_ptr.hbm [resolvable:$true] %s967
      %973 = dma.vmem_to_hbm [thread:$0]  %s966, 256, %s968, [#allocation4], 128, 128, 8
    $region49: #{tpu_custom_call.1} parent=1 // pred_fallthru
      _
    // Predicated region
    $region50: #{tpu_custom_call.1} parent=1 // pred_check
      _
    $region51: #{tpu_custom_call.1} parent=1 // pred_check_branch
      %975 = sbr.rel (0) target = $region53
    $region52: #{tpu_custom_call.1} parent=1 // pred_region
      %977 = dma.done [#allocation4], 256
    $region53: #{tpu_custom_call.1} parent=1 // pred_fallthru
      _
    %978 = vsyncpa [#allocation3], 1
    %979 = vsyncpa [#allocation6], 1
    %980 = vsyncpa [#allocation9], 1
    %981 = vsyncpa [#allocation4], 1

</llo_original>
